<compile_context>
chip_gen: v6e
topology: v6e:2x2x1
jax: 0.10.0
libtpu: 0.0.40
codegen_flags: <defaults>
</compile_context>

<pallas_src>
import functools

import jax
import jax.numpy as jnp
from jax.experimental import pallas as pl
from jax.experimental.pallas import tpu as pltpu


_DEFAULT_TILE_BYTES = 4 * 1024 * 1024  # ~4 MiB per input block (HBM roofline sweet spot)


def _sublane_multiple(dtype) -> int:
    # f32 -> 8, bf16 -> 16, int8 -> 32 (sub-32-bit dtypes pack along sublanes).
    return max(8, 32 // jnp.dtype(dtype).itemsize)


def _choose_tile_h(H, W, dtype, max_tile_bytes) -> int:
    """Largest H-tile that (a) fits the byte budget, (b) is a multiple of the
    sublane packing (so Mosaic needs no relayout), and (c) divides H exactly
    (so no ragged / out-of-bounds tile corrupts the reduction)."""
    itemsize = jnp.dtype(dtype).itemsize
    rows_budget = max(1, max_tile_bytes // max(1, W * itemsize))
    if H <= rows_budget:
        return H  # full extent: always legal, no masking
    sub = _sublane_multiple(dtype)
    tile = (rows_budget // sub) * sub
    while tile >= sub:
        if H % tile == 0:
            return tile
        tile -= sub
    # TODO(synk): mask ragged last H-tile when H has no sublane-multiple divisor
    # under the budget; fall back to the full image per step for now.
    return H


def _dice_loss_kernel(pred_ref, true_ref, out_ref, inter_ref, st_ref, sp_ref, *,
                      smooth_nr, smooth_dr, squared_pred):
    """Grid: (B, H // TILE_H). pred_ref/true_ref are the (TILE_H, W) channel-0
    slab of one sample. Partial sums accumulate in VMEM scratch across H-tiles;
    the per-sample dice is stored to out_ref at the last H-tile."""
    h = pl.program_id(1)
    n_h = pl.num_programs(1)

    @pl.when(h == 0)
    def _():
        inter_ref[...] = jnp.zeros_like(inter_ref)
        st_ref[...] = jnp.zeros_like(st_ref)
        sp_ref[...] = jnp.zeros_like(sp_ref)

    p = pred_ref[...].astype(jnp.float32)
    t = true_ref[...].astype(jnp.float32)
    if squared_pred:
        p = p * p
        t = t * t

    inter_ref[...] += jnp.sum(t * p)
    st_ref[...] += jnp.sum(t)
    sp_ref[...] += jnp.sum(p)

    @pl.when(h == n_h - 1)
    def _():
        num = 2.0 * inter_ref[...] + smooth_nr          # (1, 1)
        den = st_ref[...] + sp_ref[...] + smooth_dr     # (1, 1)
        out_ref[...] = (num / den).reshape(out_ref.shape)


def dice_coef_loss(y_pred, y_true, *, squared_pred=False,
                   smooth_nr=1e-05, smooth_dr=1e-05,
                   max_tile_bytes=_DEFAULT_TILE_BYTES):
    """y_pred, y_true: (B, C, H, W) — NCHW, matching the PyTorch module."""
    assert y_pred.shape == y_true.shape
    B, _, H, W = y_pred.shape

    itemsize = max(jnp.dtype(y_pred.dtype).itemsize, jnp.dtype(y_true.dtype).itemsize)
    tile_h = _choose_tile_h(H, W, y_pred.dtype, max_tile_bytes)
    n_h = H // tile_h

    # 2 inputs x 2 pipeline buffers per block + headroom; capped for v7x (64 MiB VMEM).
    block_bytes = tile_h * W * itemsize
    vmem_limit = int(min(48 * 1024 * 1024,
                         max(16 * 1024 * 1024, 4 * block_bytes + (2 << 20))))

    kernel = functools.partial(
        _dice_loss_kernel,
        smooth_nr=float(smooth_nr),
        smooth_dr=float(smooth_dr),
        squared_pred=bool(squared_pred),
    )

    # Channel-0 selection happens here (block index 0 on the C axis): no HBM copy.
    in_spec = pl.BlockSpec((None, None, tile_h, W), lambda b, h: (b, 0, h, 0))

    dice = pl.pallas_call(
        kernel,
        out_shape=jax.ShapeDtypeStruct((B, 1, 1), jnp.float32),
        grid_spec=pltpu.PrefetchScalarGridSpec(
            num_scalar_prefetch=0,
            grid=(B, n_h),
            in_specs=[in_spec, in_spec],
            out_specs=pl.BlockSpec((1, 1, 1), lambda b, h: (b, 0, 0)),
            scratch_shapes=[
                pltpu.VMEM((1, 1), jnp.float32),   # intersection
                pltpu.VMEM((1, 1), jnp.float32),   # sum(true)
                pltpu.VMEM((1, 1), jnp.float32),   # sum(pred)
            ],
        ),
        compiler_params=pltpu.CompilerParams(
            # Distinct per-sample output blocks -> batch axis is megacore-parallel;
            # H-tile axis carries the scratch accumulation -> arbitrary.
            dimension_semantics=("parallel", "arbitrary"),
            vmem_limit_bytes=vmem_limit,
        ),
    )(y_pred, y_true)

    # TODO(synk): for tiny spatial dims (W << 128), pack several samples per grid
    # step / lane-densify to amortize the ~0.35 us per-step overhead.
    return 1.0 - jnp.mean(dice[:, 0, 0])


def _reference(y_pred, y_true, squared_pred=False,
               smooth_nr=1e-05, smooth_dr=1e-05):
    """Pure-JAX reference mirroring the PyTorch code."""
    if squared_pred:
        y_pred = y_pred ** 2
        y_true = y_true ** 2
    t = y_true[:, 0, :, :].reshape(y_true.shape[0], -1)
    p = y_pred[:, 0, :, :].reshape(y_pred.shape[0], -1)
    inter = jnp.sum(t * p, axis=-1)
    dice = (2.0 * inter + smooth_nr) / (jnp.sum(t, -1) + jnp.sum(p, -1) + smooth_dr)
    return 1.0 - jnp.mean(dice)


if __name__ == "__main__":
    key = jax.random.PRNGKey(0)
    k1, k2, k3, k4 = jax.random.split(key, 4)

    # Test 1: small NCHW case (single H-tile per sample).
    B, C, H, W = 2, 4, 16, 16
    y_pred = jax.random.uniform(k1, (B, C, H, W), dtype=jnp.float32)
    y_true = (jax.random.uniform(k2, (B, C, H, W)) > 0.5).astype(jnp.float32)

    loss = jax.block_until_ready(dice_coef_loss(y_pred, y_true))
    ref = _reference(y_pred, y_true)
    assert jnp.allclose(loss, ref, atol=1e-5, rtol=1e-5), (loss, ref)

    loss_sq = jax.block_until_ready(dice_coef_loss(y_pred, y_true, squared_pred=True))
    ref_sq = _reference(y_pred, y_true, squared_pred=True)
    assert jnp.allclose(loss_sq, ref_sq, atol=1e-5, rtol=1e-5), (loss_sq, ref_sq)

    # Test 2: force the multi-H-tile accumulation path (tile_h = 8 -> 4 tiles).
    B2, C2, H2, W2 = 2, 2, 32, 128
    y_pred2 = jax.random.uniform(k3, (B2, C2, H2, W2), dtype=jnp.float32)
    y_true2 = (jax.random.uniform(k4, (B2, C2, H2, W2)) > 0.5).astype(jnp.float32)

    loss2 = jax.block_until_ready(
        dice_coef_loss(y_pred2, y_true2, max_tile_bytes=8 * W2 * 4))
    ref2 = _reference(y_pred2, y_true2)
    assert jnp.allclose(loss2, ref2, atol=1e-4, rtol=1e-4), (loss2, ref2)

    print("KERNEL_OK")
</pallas_src>

<mosaic_0001>
module attributes {stable_mosaic.version = 11 : i64} {
  func.func @_dice_loss_kernel(%arg0: i32, %arg1: i32, %arg2: memref<1x1x16x16xf32, #tpu.memory_space<vmem>>, %arg3: memref<1x1x16x16xf32, #tpu.memory_space<vmem>>, %arg4: memref<1x1x1xf32, #tpu.memory_space<vmem>>, %arg5: memref<1x1xf32, #tpu.memory_space<vmem>>, %arg6: memref<1x1xf32, #tpu.memory_space<vmem>>, %arg7: memref<1x1xf32, #tpu.memory_space<vmem>>) attributes {dimension_semantics = [#tpu.dimension_semantics<parallel>, #tpu.dimension_semantics<arbitrary>], iteration_bounds = array<i64: 2, 1>, scalar_prefetch = 0 : i64, scratch_operands = 3 : i64, tpu.core_type = #tpu.core_type<tc>, window_params = [{transform_indices = @transform_0, window_bounds = array<i64: 1, 1, 16, 16>}, {transform_indices = @transform_1, window_bounds = array<i64: 1, 1, 16, 16>}, {transform_indices = @transform_2, window_bounds = array<i64: 1, 1, 1>}]} {
    %c0_i32 = arith.constant 0 : i32
    %0 = arith.cmpi eq, %arg1, %c0_i32 : i32
    %1 = arith.extui %0 : i1 to i32
    %c0_i32_0 = arith.constant 0 : i32
    %2 = arith.cmpi ne, %1, %c0_i32_0 : i32
    scf.if %2 {
      %cst_24 = arith.constant 0.000000e+00 : f32
      %35 = vector.broadcast %cst_24 : f32 to vector<1x1xf32>
      %c0_25 = arith.constant 0 : index
      %c0_26 = arith.constant 0 : index
      %36 = vector.load %arg5[%c0_25, %c0_26] : memref<1x1xf32, #tpu.memory_space<vmem>>, vector<1x1xf32>
      tpu.vector_store %arg5[%c0_25, %c0_26], %35 {strides = array<i32>} : memref<1x1xf32, #tpu.memory_space<vmem>>, vector<1x1xf32>,
      %cst_27 = arith.constant 0.000000e+00 : f32
      %37 = vector.broadcast %cst_27 : f32 to vector<1x1xf32>
      %c0_28 = arith.constant 0 : index
      %c0_29 = arith.constant 0 : index
      %38 = vector.load %arg6[%c0_28, %c0_29] : memref<1x1xf32, #tpu.memory_space<vmem>>, vector<1x1xf32>
      tpu.vector_store %arg6[%c0_28, %c0_29], %37 {strides = array<i32>} : memref<1x1xf32, #tpu.memory_space<vmem>>, vector<1x1xf32>,
      %cst_30 = arith.constant 0.000000e+00 : f32
      %39 = vector.broadcast %cst_30 : f32 to vector<1x1xf32>
      %c0_31 = arith.constant 0 : index
      %c0_32 = arith.constant 0 : index
      %40 = vector.load %arg7[%c0_31, %c0_32] : memref<1x1xf32, #tpu.memory_space<vmem>>, vector<1x1xf32>
      tpu.vector_store %arg7[%c0_31, %c0_32], %39 {strides = array<i32>} : memref<1x1xf32, #tpu.memory_space<vmem>>, vector<1x1xf32>,
    } else {
    }
    %c0 = arith.constant 0 : index
    %c0_1 = arith.constant 0 : index
    %c0_2 = arith.constant 0 : index
    %c0_3 = arith.constant 0 : index
    %3 = vector.load %arg2[%c0, %c0_1, %c0_2, %c0_3] : memref<1x1x16x16xf32, #tpu.memory_space<vmem>>, vector<1x1x16x16xf32>
    %4 = vector.shape_cast %3 : vector<1x1x16x16xf32> to vector<16x16xf32>
    %c0_4 = arith.constant 0 : index
    %c0_5 = arith.constant 0 : index
    %c0_6 = arith.constant 0 : index
    %c0_7 = arith.constant 0 : index
    %5 = vector.load %arg3[%c0_4, %c0_5, %c0_6, %c0_7] : memref<1x1x16x16xf32, #tpu.memory_space<vmem>>, vector<1x1x16x16xf32>
    %6 = vector.shape_cast %5 : vector<1x1x16x16xf32> to vector<16x16xf32>
    %c0_8 = arith.constant 0 : index
    %c0_9 = arith.constant 0 : index
    %7 = vector.load %arg5[%c0_8, %c0_9] : memref<1x1xf32, #tpu.memory_space<vmem>>, vector<1x1xf32>
    %8 = arith.mulf %6, %4 : vector<16x16xf32>
    %9 = vector.shape_cast %8 : vector<16x16xf32> to vector<1x16x16xf32>
    %cst = arith.constant dense<0.000000e+00> : vector<1xf32>
    %10 = vector.multi_reduction <add>, %9, %cst [1, 2] : vector<1x16x16xf32> to vector<1xf32>
    %11 = vector.shape_cast %10 : vector<1xf32> to vector<1x1x1xf32>
    %12 = vector.extract %11[0, 0, 0] : f32 from vector<1x1x1xf32>
    %13 = vector.broadcast %12 : f32 to vector<1x1xf32>
    %14 = arith.addf %7, %13 : vector<1x1xf32>
    %c0_10 = arith.constant 0 : index
    %c0_11 = arith.constant 0 : index
    %15 = vector.load %arg5[%c0_10, %c0_11] : memref<1x1xf32, #tpu.memory_space<vmem>>, vector<1x1xf32>
    tpu.vector_store %arg5[%c0_10, %c0_11], %14 {strides = array<i32>} : memref<1x1xf32, #tpu.memory_space<vmem>>, vector<1x1xf32>,
    %c0_12 = arith.constant 0 : index
    %c0_13 = arith.constant 0 : index
    %16 = vector.load %arg6[%c0_12, %c0_13] : memref<1x1xf32, #tpu.memory_space<vmem>>, vector<1x1xf32>
    %17 = vector.shape_cast %6 : vector<16x16xf32> to vector<1x16x16xf32>
    %cst_14 = arith.constant dense<0.000000e+00> : vector<1xf32>
    %18 = vector.multi_reduction <add>, %17, %cst_14 [1, 2] : vector<1x16x16xf32> to vector<1xf32>
    %19 = vector.shape_cast %18 : vector<1xf32> to vector<1x1x1xf32>
    %20 = vector.extract %19[0, 0, 0] : f32 from vector<1x1x1xf32>
    %21 = vector.broadcast %20 : f32 to vector<1x1xf32>
    %22 = arith.addf %16, %21 : vector<1x1xf32>
    %c0_15 = arith.constant 0 : index
    %c0_16 = arith.constant 0 : index
    %23 = vector.load %arg6[%c0_15, %c0_16] : memref<1x1xf32, #tpu.memory_space<vmem>>, vector<1x1xf32>
    tpu.vector_store %arg6[%c0_15, %c0_16], %22 {strides = array<i32>} : memref<1x1xf32, #tpu.memory_space<vmem>>, vector<1x1xf32>,
    %c0_17 = arith.constant 0 : index
    %c0_18 = arith.constant 0 : index
    %24 = vector.load %arg7[%c0_17, %c0_18] : memref<1x1xf32, #tpu.memory_space<vmem>>, vector<1x1xf32>
    %25 = vector.shape_cast %4 : vector<16x16xf32> to vector<1x16x16xf32>
    %cst_19 = arith.constant dense<0.000000e+00> : vector<1xf32>
    %26 = vector.multi_reduction <add>, %25, %cst_19 [1, 2] : vector<1x16x16xf32> to vector<1xf32>
    %27 = vector.shape_cast %26 : vector<1xf32> to vector<1x1x1xf32>
    %28 = vector.extract %27[0, 0, 0] : f32 from vector<1x1x1xf32>
    %29 = vector.broadcast %28 : f32 to vector<1x1xf32>
    %30 = arith.addf %24, %29 : vector<1x1xf32>
    %c0_20 = arith.constant 0 : index
    %c0_21 = arith.constant 0 : index
    %31 = vector.load %arg7[%c0_20, %c0_21] : memref<1x1xf32, #tpu.memory_space<vmem>>, vector<1x1xf32>
    tpu.vector_store %arg7[%c0_20, %c0_21], %30 {strides = array<i32>} : memref<1x1xf32, #tpu.memory_space<vmem>>, vector<1x1xf32>,
    %c0_i32_22 = arith.constant 0 : i32
    %32 = arith.cmpi eq, %arg1, %c0_i32_22 : i32
    %33 = arith.extui %32 : i1 to i32
    %c0_i32_23 = arith.constant 0 : i32
    %34 = arith.cmpi ne, %33, %c0_i32_23 : i32
    scf.if %34 {
      %c0_24 = arith.constant 0 : index
      %c0_25 = arith.constant 0 : index
      %35 = vector.load %arg5[%c0_24, %c0_25] : memref<1x1xf32, #tpu.memory_space<vmem>>, vector<1x1xf32>
      %cst_26 = arith.constant 2.000000e+00 : f32
      %36 = vector.broadcast %cst_26 : f32 to vector<1x1xf32>
      %37 = arith.mulf %36, %35 : vector<1x1xf32>
      %cst_27 = arith.constant 9.99999974E-6 : f32
      %38 = vector.broadcast %cst_27 : f32 to vector<1x1xf32>
      %39 = arith.addf %37, %38 : vector<1x1xf32>
      %c0_28 = arith.constant 0 : index
      %c0_29 = arith.constant 0 : index
      %40 = vector.load %arg6[%c0_28, %c0_29] : memref<1x1xf32, #tpu.memory_space<vmem>>, vector<1x1xf32>
      %c0_30 = arith.constant 0 : index
      %c0_31 = arith.constant 0 : index
      %41 = vector.load %arg7[%c0_30, %c0_31] : memref<1x1xf32, #tpu.memory_space<vmem>>, vector<1x1xf32>
      %42 = arith.addf %40, %41 : vector<1x1xf32>
      %cst_32 = arith.constant 9.99999974E-6 : f32
      %43 = vector.broadcast %cst_32 : f32 to vector<1x1xf32>
      %44 = arith.addf %42, %43 : vector<1x1xf32>
      %45 = arith.divf %39, %44 : vector<1x1xf32>
      %46 = vector.shape_cast %45 : vector<1x1xf32> to vector<1x1x1xf32>
      %c0_33 = arith.constant 0 : index
      %c0_34 = arith.constant 0 : index
      %c0_35 = arith.constant 0 : index
      %47 = vector.load %arg4[%c0_33, %c0_34, %c0_35] : memref<1x1x1xf32, #tpu.memory_space<vmem>>, vector<1x1x1xf32>
      tpu.vector_store %arg4[%c0_33, %c0_34, %c0_35], %46 {strides = array<i32>} : memref<1x1x1xf32, #tpu.memory_space<vmem>>, vector<1x1x1xf32>,
    } else {
    }
    return
  }
  func.func @transform_0(%arg0: i32, %arg1: i32) -> (i32, i32, i32, i32) {
    %c0_i32 = arith.constant 0 : i32
    %c0_i32_0 = arith.constant 0 : i32
    %c0_i32_1 = arith.constant 0 : i32
    return %arg0, %c0_i32, %arg1, %c0_i32_0 : i32, i32, i32, i32
  }
  func.func @transform_1(%arg0: i32, %arg1: i32) -> (i32, i32, i32, i32) {
    %c0_i32 = arith.constant 0 : i32
    %c0_i32_0 = arith.constant 0 : i32
    %c0_i32_1 = arith.constant 0 : i32
    return %arg0, %c0_i32, %arg1, %c0_i32_0 : i32, i32, i32, i32
  }
  func.func @transform_2(%arg0: i32, %arg1: i32) -> (i32, i32, i32) {
    %c0_i32 = arith.constant 0 : i32
    %c0_i32_0 = arith.constant 0 : i32
    %c0_i32_1 = arith.constant 0 : i32
    return %arg0, %c0_i32, %c0_i32_0 : i32, i32, i32
  }
}

</mosaic_0001>

<llo_original>
// kernel: tpu_custom_call.1
$region0: #{tpu_custom_call.1}
  #allocation0 [shape = 'u32[]', space=smem, size = 0x4, offset = 0x4, fixed_abs, tag = 'smem constant byte address 0x4 - core index']
  #allocation1 [shape = 'u32[144,128]{1,0:T(1,128)}', space=vmem, size = 0x12000, scoped, tag = 'internal scratch']
  #allocation2 [shape = 'f32[1,1]{1,0:T(1,128)}', space=vmem, size = 0x200, scoped, tag = 'scratch operand']
  #allocation3 [shape = 'f32[1,1]{1,0:T(1,128)}', space=vmem, size = 0x200, scoped, tag = 'scratch operand']
  #allocation4 [shape = 'f32[1,1]{1,0:T(1,128)}', space=vmem, size = 0x200, scoped, tag = 'scratch operand']
  %s0 = inlined_call_operand.hbm [shape: f32[2,4,16,16], index: 0, kind: input, shape index: {}]
  %s1 = inlined_call_operand.hbm [shape: f32[2,4,16,16], index: 1, kind: input, shape index: {}]
  %s2 = inlined_call_operand.vmem [shape: f32[2,1,1], index: 2, kind: output, shape index: {}]
  %s3 = sld [smem:[#allocation0]]
  $region57: #{tpu_custom_call.1} parent=0
    _
  %s5 = ssub.s32 1, %s3
  %s6 = scalar_select 0, %s5, %s3
  $region1: #{tpu_custom_call.1} parent=0
    #allocation5 [shape = 'u8[16384]{0}', space=vmem, size = 0x4000, scoped, tag = 'input window, operand 0']
    #allocation6 [shape = 's32[2]{0}', space=sflag, size = 0x8, scoped, tag = 'scoped memory for tpu_custom_call.1']
    #allocation7 [shape = 'u8[16384]{0}', space=vmem, size = 0x4000, scoped, tag = 'input window, operand 1']
    #allocation8 [shape = 's32[2]{0}', space=sflag, size = 0x8, scoped, tag = 'scoped memory for tpu_custom_call.1']
    %7 = vsyncpa [#allocation6], 0
    %s8 = scalar_lea.sflag [#allocation6], 1
    %9 = vsyncpa %s8, 0
    %10 = vsyncpa [#allocation8], 0
    %s11 = scalar_lea.sflag [#allocation8], 1
    %12 = vsyncpa %s11, 0
    loop: start=0, step=1, limit=4
    $region2: #{tpu_custom_call.1} parent=1 // loop_pre_header
      _
    $region3: #{tpu_custom_call.1} parent=1 // loop_header
      %s14 = sphi 0, %s18
      %p15 = scmp.ge.s32.totalorder %s14, 4
      %s21 = sphi 0, %s33
      %s22 = sphi 0, %s29
      %s23 = sphi 0, %s21
      %s24 = sphi 0, %s22
      %s25 = sphi 0, %s23
      %s26 = sphi 0, %s24
      %s38 = sphi 0, %s40
      %s41 = sphi 0, %s38
      %s42 = sphi 0, %s41
      %s58 = sphi 0, %s42
      %s66 = sphi 0, %s68
      %s69 = sphi 0, %s66
      %s70 = sphi 0, %s69
      %s86 = sphi 0, %s70
      %s92 = sphi 0, %s94
      %s95 = sphi 0, %s92
      %s96 = sphi 0, %s95
      %s112 = sphi 0, %s96
    $region4: #{tpu_custom_call.1} parent=1 // loop_header_branch
      %17 = sbr.rel (%p15) target = $region8
    $region5: #{tpu_custom_call.1} parent=1 // loop_body
      %s19 = ssub.s32 %s14, 1
      %s20 = ssub.s32 %s14, 2
      %s27 = sadd.s32 1, %s22
      %p28 = scmp.ge.s32.totalorder %s27, 1
      %s29 = scalar_select %p28, 0, %s27
      %s30 = sadd.s32 1, %s21
      %s31 = scalar_select %p28, %s30, %s21
      %p32 = scmp.ge.s32.totalorder %s31, 2
      %s33 = scalar_select %p32, 0, %s31
      %s34 = ssub.s32 %s21, %s33
      %s35 = ssub.s32 %s22, %s29
      %s36 = sor.u32 %s34, %s35
      %p37 = scmp.eq.s32.totalorder %s36, 0
      %s39 = sadd.s32 %s38, 1
      %s40 = scalar_select %p37, %s38, %s39
      %p43 = pneg %p37
      %p44 = scmp.eq.s32.totalorder %s14, 1
      %p45 = por %p43, %p44
      %p46 = scmp.ne.s32.totalorder %s38, %s41
      %p47 = scmp.eq.s32.totalorder %s14, 0
      %p48 = por %p46, %p47
      %p49 = scmp.ne.s32.totalorder %s38, %s41
      %p50 = scmp.eq.s32.totalorder %s19, 1
      %p51 = por %p49, %p50
      %p52 = scmp.ne.s32.totalorder %s41, %s42
      %p53 = scmp.eq.s32.totalorder %s19, 0
      %p54 = por %p52, %p53
      %p55 = scmp.ne.s32.totalorder %s41, %s42
      %p56 = scmp.eq.s32.totalorder %s20, 1
      %p57 = por %p55, %p56
      %p59 = scmp.ne.s32.totalorder %s42, %s58
      %p60 = scmp.eq.s32.totalorder %s20, 0
      %p61 = por %p59, %p60
      %s62 = ssub.s32 %s21, %s33
      %s63 = ssub.s32 %s22, %s29
      %s64 = sor.u32 %s62, %s63
      %p65 = scmp.eq.s32.totalorder %s64, 0
      %s67 = sadd.s32 %s66, 1
      %s68 = scalar_select %p65, %s66, %s67
      %p71 = pneg %p65
      %p72 = scmp.eq.s32.totalorder %s14, 1
      %p73 = por %p71, %p72
      %p74 = scmp.ne.s32.totalorder %s66, %s69
      %p75 = scmp.eq.s32.totalorder %s14, 0
      %p76 = por %p74, %p75
      %p77 = scmp.ne.s32.totalorder %s66, %s69
      %p78 = scmp.eq.s32.totalorder %s19, 1
      %p79 = por %p77, %p78
      %p80 = scmp.ne.s32.totalorder %s69, %s70
      %p81 = scmp.eq.s32.totalorder %s19, 0
      %p82 = por %p80, %p81
      %p83 = scmp.ne.s32.totalorder %s69, %s70
      %p84 = scmp.eq.s32.totalorder %s20, 1
      %p85 = por %p83, %p84
      %p87 = scmp.ne.s32.totalorder %s70, %s86
      %p88 = scmp.eq.s32.totalorder %s20, 0
      %p89 = por %p87, %p88
      %s90 = ssub.s32 %s21, %s33
      %p91 = scmp.eq.s32.totalorder %s90, 0
      %s93 = sadd.s32 %s92, 1
      %s94 = scalar_select %p91, %s92, %s93
      %p97 = pneg %p91
      %p98 = scmp.eq.s32.totalorder %s14, 1
      %p99 = por %p97, %p98
      %p100 = scmp.ne.s32.totalorder %s92, %s95
      %p101 = scmp.eq.s32.totalorder %s14, 0
      %p102 = por %p100, %p101
      %p103 = scmp.ne.s32.totalorder %s92, %s95
      %p104 = scmp.eq.s32.totalorder %s19, 1
      %p105 = por %p103, %p104
      %p106 = scmp.ne.s32.totalorder %s95, %s96
      %p107 = scmp.eq.s32.totalorder %s19, 0
      %p108 = por %p106, %p107
      %p109 = scmp.ne.s32.totalorder %s95, %s96
      %p110 = scmp.eq.s32.totalorder %s20, 1
      %p111 = por %p109, %p110
      %p113 = scmp.ne.s32.totalorder %s96, %s112
      %p114 = scmp.eq.s32.totalorder %s20, 0
      %p115 = por %p113, %p114
      %p116 = scmp.le.s32.totalorder 1, %s14
      %p117 = scmp.lt.s32.totalorder %s14, 3
      %p118 = pnand %p116, %p117
      %p119 = pneg %p118
      // Predicated region
      $region9: #{tpu_custom_call.1} parent=5 // pred_check
        _
      $region10: #{tpu_custom_call.1} parent=5 // pred_check_branch
        %121 = sbr.rel (%p118) target = $region12
      $region11: #{tpu_custom_call.1} parent=5 // pred_region
        %s122 = ssub.s32 %s14, 1
      $region12: #{tpu_custom_call.1} parent=5 // pred_fallthru
        _
      %p123 = scmp.lt.s32.totalorder %s14, 2
      // Predicated region
      $region13: #{tpu_custom_call.1} parent=5 // pred_check
        %p124 = pneg %p123
      $region14: #{tpu_custom_call.1} parent=5 // pred_check_branch
        %126 = sbr.rel (%p124) target = $region16
      $region15: #{tpu_custom_call.1} parent=5 // pred_region
        // Predicated region
        $region17: #{tpu_custom_call.1} parent=15 // pred_check
          %p127 = pneg %p48
        $region18: #{tpu_custom_call.1} parent=15 // pred_check_branch
          %129 = sbr.rel (%p127) target = $region20
        $region19: #{tpu_custom_call.1} parent=15 // pred_region
          %s130 = sand.u32 %s38, 1
          %s131 = scalar_lea.sflag [#allocation6], %s130
          %s132 = sand.u32 %s38, 1
          %s133 = smul.addr %s132, 16
          %s134 = scalar_lea.vmem [#allocation5], %s133
          %s135 = smul.u32 2, %s22
          %s137 = ssub.s32 256, 256
          %138 = vsyncadd %s131, %s137
          %s139 = smul.addr %s21, 8
          %s140 = sadd.s32 %s135, %s139
          %s141 = smul.addr %s140, 128
          %s142 = scalar_lea.hbm %s0, %s141
          %s143 = sshll.u32 %s134, 4
          %s144 = int_to_ptr.vmem [resolvable:$true] %s143
          %149 = dma.hbm_to_vmem [thread:$0]  %s142, 256, %s144, %s131, 128, 128, 8
        $region20: #{tpu_custom_call.1} parent=15 // pred_fallthru
          _
        // Predicated region
        $region21: #{tpu_custom_call.1} parent=15 // pred_check
          %p150 = pneg %p76
        $region22: #{tpu_custom_call.1} parent=15 // pred_check_branch
          %152 = sbr.rel (%p150) target = $region24
        $region23: #{tpu_custom_call.1} parent=15 // pred_region
          %s153 = sand.u32 %s66, 1
          %s154 = scalar_lea.sflag [#allocation8], %s153
          %s155 = sand.u32 %s66, 1
          %s156 = smul.addr %s155, 16
          %s157 = scalar_lea.vmem [#allocation7], %s156
          %s158 = smul.u32 2, %s22
          %s160 = ssub.s32 256, 256
          %161 = vsyncadd %s154, %s160
          %s162 = smul.addr %s21, 8
          %s163 = sadd.s32 %s158, %s162
          %s164 = smul.addr %s163, 128
          %s165 = scalar_lea.hbm %s1, %s164
          %s166 = sshll.u32 %s157, 4
          %s167 = int_to_ptr.vmem [resolvable:$true] %s166
          %172 = dma.hbm_to_vmem [thread:$0]  %s165, 256, %s167, %s154, 128, 128, 8
        $region24: #{tpu_custom_call.1} parent=15 // pred_fallthru
          _
      $region16: #{tpu_custom_call.1} parent=5 // pred_fallthru
        _
      %p173 = scmp.le.s32.totalorder 1, %s14
      %p174 = scmp.lt.s32.totalorder %s14, 3
      %p175 = pnand %p173, %p174
      %p176 = pneg %p175
      // Predicated region
      $region25: #{tpu_custom_call.1} parent=5 // pred_check
        _
      $region26: #{tpu_custom_call.1} parent=5 // pred_check_branch
        %178 = sbr.rel (%p175) target = $region28
      $region27: #{tpu_custom_call.1} parent=5 // pred_region
        %s179 = ssub.s32 %s14, 1
        %s180 = sand.u32 %s41, 1
        %s181 = scalar_lea.sflag [#allocation6], %s180
        %s182 = sand.u32 %s41, 1
        %s183 = smul.addr %s182, 16
        %s184 = scalar_lea.vmem [#allocation5], %s183
        // Predicated region
        $region29: #{tpu_custom_call.1} parent=27 // pred_check
          %p185 = pneg %p54
        $region30: #{tpu_custom_call.1} parent=27 // pred_check_branch
          %187 = sbr.rel (%p185) target = $region32
        $region31: #{tpu_custom_call.1} parent=27 // pred_region
          %188 = dma.done %s181, 256
        $region32: #{tpu_custom_call.1} parent=27 // pred_fallthru
          _
        %s189 = sand.u32 %s69, 1
        %s190 = scalar_lea.sflag [#allocation8], %s189
        %s191 = sand.u32 %s69, 1
        %s192 = smul.addr %s191, 16
        %s193 = scalar_lea.vmem [#allocation7], %s192
        // Predicated region
        $region33: #{tpu_custom_call.1} parent=27 // pred_check
          %p194 = pneg %p82
        $region34: #{tpu_custom_call.1} parent=27 // pred_check_branch
          %196 = sbr.rel (%p194) target = $region36
        $region35: #{tpu_custom_call.1} parent=27 // pred_region
          %197 = dma.done %s190, 256
        $region36: #{tpu_custom_call.1} parent=27 // pred_fallthru
          _
        %s198 = sand.u32 %s41, 1
        %s199 = scalar_lea.sflag [#allocation6], %s198
        %s200 = sand.u32 %s41, 1
        %s201 = smul.addr %s200, 16
        %s202 = scalar_lea.vmem [#allocation5], %s201
        %p203 = pneg %p54
        %p204 = pneg %p51
        %s205 = sand.u32 %s69, 1
        %s206 = scalar_lea.sflag [#allocation8], %s205
        %s207 = sand.u32 %s69, 1
        %s208 = smul.addr %s207, 16
        %s209 = scalar_lea.vmem [#allocation7], %s208
        %p210 = pneg %p82
        %p211 = pneg %p79
        %p212 = pneg %p108
        %p213 = pneg %p105
        %p214 = scmp.lt.s32.totalorder %s23, 1
        %s215 = scalar_select %p214, %s23, 1
        %s216 = scalar_lea.vmem %s2, %s215
        %s217 = smul.u32 2, %s24
        %s218 = smul.u32 2, %s24
        %p219 = scmp.lt.s32.totalorder %s23, 1
        %s220 = scalar_select %p219, %s23, 1
        %s221 = scalar_lea.vmem %s2, %s220
        %p222 = scmp.eq.s32.totalorder %s24, 0
        // Predicated region
        $region37: #{tpu_custom_call.1} parent=27 // pred_check
          %p223 = pneg %p222
        $region38: #{tpu_custom_call.1} parent=27 // pred_check_branch
          %225 = sbr.rel (%p223) target = $region40
        $region39: #{tpu_custom_call.1} parent=27 // pred_region
          %vm226 = vcmask 0
          %227 = vst.msk [vmem:[#allocation2] sm:$0x1] %vm226, 0.0
          %228 = vst.msk [vmem:[#allocation3] sm:$0x1] %vm226, 0.0
          %229 = vst.msk [vmem:[#allocation4] sm:$0x1] %vm226, 0.0
        $region40: #{tpu_custom_call.1} parent=27 // pred_fallthru
          _
        %v230 = vld [vmem:[%s184] sm:$0xff]
        %v231 = vld [vmem:[%s184 + $0x8] sm:$0xff]
        %v232 = vld [vmem:[%s193] sm:$0xff]
        %v233 = vld [vmem:[%s193 + $0x8] sm:$0xff]
        %v234 = vld [vmem:[#allocation2] sm:$0x1]
        %v235 = vmul.f32 %v232, %v230
        %v236 = vmul.f32 %v233, %v231
        %vm237 = vcmask 130048
        %v238 = vsel %vm237, %v235, 0.0
        %v239 = vsel %vm237, %v236, 0.0
        %v240 = vadd.f32 %v238, %v239
        %241 = vadd.xlane.f32.xlu0 %v240
        %v242 = vpop.xlane.xlu0 %241
        %v243 = vrot.slane %v242, 4
        %v244 = vadd.f32 %v242, %v243
        %v245 = vrot.slane %v244, 2
        %v246 = vadd.f32 %v244, %v245
        %v247 = vrot.slane %v246, 1
        %v248 = vadd.f32 %v246, %v247
        %s249 = vtos %v248
        %v250 = vstv %s249
        %v251 = vadd.f32 %v234, %v250
        %vm252 = vcmask 0
        %253 = vst.msk [vmem:[#allocation2] sm:$0x1] %vm252, %v251
        %v254 = vld [vmem:[#allocation3] sm:$0x1]
        %v255 = vsel %vm237, %v232, 0.0
        %v256 = vsel %vm237, %v233, 0.0
        %v257 = vadd.f32 %v255, %v256
        %258 = vadd.xlane.f32.xlu0 %v257
        %v259 = vpop.xlane.xlu0 %258
        %v260 = vrot.slane %v259, 4
        %v261 = vadd.f32 %v259, %v260
        %v262 = vrot.slane %v261, 2
        %v263 = vadd.f32 %v261, %v262
        %v264 = vrot.slane %v263, 1
        %v265 = vadd.f32 %v263, %v264
        %s266 = vtos %v265
        %v267 = vstv %s266
        %v268 = vadd.f32 %v254, %v267
        %269 = vst.msk [vmem:[#allocation3] sm:$0x1] %vm252, %v268
        %v270 = vld [vmem:[#allocation4] sm:$0x1]
        %v271 = vsel %vm237, %v230, 0.0
        %v272 = vsel %vm237, %v231, 0.0
        %v273 = vadd.f32 %v271, %v272
        %274 = vadd.xlane.f32.xlu0 %v273
        %v275 = vpop.xlane.xlu0 %274
        %v276 = vrot.slane %v275, 4
        %v277 = vadd.f32 %v275, %v276
        %v278 = vrot.slane %v277, 2
        %v279 = vadd.f32 %v277, %v278
        %v280 = vrot.slane %v279, 1
        %v281 = vadd.f32 %v279, %v280
        %s282 = vtos %v281
        %v283 = vstv %s282
        %v284 = vadd.f32 %v270, %v283
        %285 = vst.msk [vmem:[#allocation4] sm:$0x1] %vm252, %v284
        // Predicated region
        $region41: #{tpu_custom_call.1} parent=27 // pred_check
          %p286 = pneg %p222
        $region42: #{tpu_custom_call.1} parent=27 // pred_check_branch
          %288 = sbr.rel (%p286) target = $region44
        $region43: #{tpu_custom_call.1} parent=27 // pred_region
          %v289 = vld [vmem:[#allocation2] sm:$0x1]
          %v290 = vmul.f32 %v289, 2.0
          %v291 = vadd.f32 %v290, 1e-05
          %v292 = vld [vmem:[#allocation3] sm:$0x1]
          %v293 = vld [vmem:[#allocation4] sm:$0x1]
          %v294 = vadd.f32 %v292, %v293
          %v295 = vadd.f32 %v294, 1e-05
          %v296 = vrcp.pop %v295
          %v297 = vmul.f32 %v291, %v296
          %298 = vst.msk [vmem:[%s221] sm:$0x1] %vm252, %v297
        $region44: #{tpu_custom_call.1} parent=27 // pred_fallthru
          _
        %p299 = scmp.lt.s32.totalorder %s23, 1
        %s300 = scalar_select %p299, %s23, 1
        %s301 = scalar_lea.vmem %s2, %s300
        // Predicated region
        $region45: #{tpu_custom_call.1} parent=27 // pred_check
          %p302 = pneg %p105
        $region46: #{tpu_custom_call.1} parent=27 // pred_check_branch
          %304 = sbr.rel (%p302) target = $region48
        $region47: #{tpu_custom_call.1} parent=27 // pred_region
          _
        $region48: #{tpu_custom_call.1} parent=27 // pred_fallthru
          _
      $region28: #{tpu_custom_call.1} parent=5 // pred_fallthru
        _
      %p305 = scmp.le.s32.totalorder 2, %s14
      // Predicated region
      $region49: #{tpu_custom_call.1} parent=5 // pred_check
        %p306 = pneg %p305
      $region50: #{tpu_custom_call.1} parent=5 // pred_check_branch
        %308 = sbr.rel (%p306) target = $region52
      $region51: #{tpu_custom_call.1} parent=5 // pred_region
        %s309 = ssub.s32 %s14, 2
        // Predicated region
        $region53: #{tpu_custom_call.1} parent=51 // pred_check
          %p310 = pneg %p111
        $region54: #{tpu_custom_call.1} parent=51 // pred_check_branch
          %312 = sbr.rel (%p310) target = $region56
        $region55: #{tpu_custom_call.1} parent=51 // pred_region
          %p313 = scmp.lt.s32.totalorder %s25, 1
          %s314 = scalar_select %p313, %s25, 1
          %s315 = scalar_lea.vmem %s2, %s314
        $region56: #{tpu_custom_call.1} parent=51 // pred_fallthru
          _
      $region52: #{tpu_custom_call.1} parent=5 // pred_fallthru
        _
    $region6: #{tpu_custom_call.1} parent=1 // loop_footer
      %s18 = sadd.s32 1, %s14
    $region7: #{tpu_custom_call.1} parent=1 // loop_footer_branch
      %13 = sbr.rel target = $region3
    $region8: #{tpu_custom_call.1} parent=1 // loop_exit
      _
    %316 = vsyncpa [#allocation6], 1
    %s317 = scalar_lea.sflag [#allocation6], 1
    %318 = vsyncpa %s317, 1
    %319 = vsyncpa [#allocation8], 1
    %s320 = scalar_lea.sflag [#allocation8], 1
    %321 = vsyncpa %s320, 1

</llo_original>
